<compile_context>
chip_gen: v7x
topology: tpu7x:2x2x1
jax: 0.10.0
libtpu: 0.0.40
codegen_flags: <defaults>
</compile_context>

<pallas_src>
import jax
import jax.numpy as jnp
from jax.experimental import pallas as pl
from jax.experimental.pallas import tpu as pltpu

HIDDEN = 50
CLASSES = 10
PAD = 128            # lane-padded width for hidden and class dims
IN_FEATURES = 784


def _round_up(n, m):
    return ((n + m - 1) // m) * m


def mnist_mlp_kernel(x_ref, w1_ref, b1_ref, w2_ref, b2_ref, o_ref):
    # x:  (TILE_B, 784) f32/bf16   w1: (784, 128) bf16   b1: (1, 128) f32
    # w2: (128, 128)    bf16       b2: (1, 128)   f32    o:  (TILE_B, 128) bf16
    x = x_ref[...].astype(jnp.bfloat16)   # in-kernel cast; no extra HBM pass

    # layer1: Linear(784, 50->128 padded) + tanh   (bf16 MXU, f32 accumulate)
    h = jnp.dot(x, w1_ref[...], preferred_element_type=jnp.float32) + b1_ref[...]
    h = jnp.tanh(h)          # padded hidden lanes: tanh(0) = 0 -> no effect below

    # layer2: Linear(50->128, 10->128 padded) + relu   (bf16 MXU, f32 accumulate)
    z = jnp.dot(h.astype(jnp.bfloat16), w2_ref[...],
                preferred_element_type=jnp.float32) + b2_ref[...]
    z = jnp.maximum(z, jnp.float32(0.0))

    # mask the 118 padded logit lanes to -inf BEFORE the log-softmax reduction
    lane = jax.lax.broadcasted_iota(jnp.int32, z.shape, 1)
    z = jnp.where(lane < CLASSES, z, -jnp.inf)

    # log_softmax along dim=1 (numerically stable)
    m = jnp.max(z, axis=1, keepdims=True)
    shifted = z - m
    lse = jnp.log(jnp.sum(jnp.exp(shifted), axis=1, keepdims=True))
    o_ref[...] = (shifted - lse).astype(o_ref.dtype)


def prepare_params(w1, b1, w2, b2):
    """One-time (hoisted out of the forward path) pad + cast of the weights.

    w1: (784,50)  b1: (1,50)  w2: (50,10)  b2: (1,10)  (float32)
    Returns lane-padded (…,128) tensors: W1/W2 bf16, b1/b2 f32.
    """
    w1_p = jnp.zeros((IN_FEATURES, PAD), jnp.bfloat16).at[:, :HIDDEN].set(
        w1.astype(jnp.bfloat16))
    b1_p = jnp.zeros((1, PAD), jnp.float32).at[:, :HIDDEN].set(
        b1.astype(jnp.float32))
    w2_p = jnp.zeros((PAD, PAD), jnp.bfloat16).at[:HIDDEN, :CLASSES].set(
        w2.astype(jnp.bfloat16))
    b2_p = jnp.zeros((1, PAD), jnp.float32).at[:, :CLASSES].set(
        b2.astype(jnp.float32))
    return w1_p, b1_p, w2_p, b2_p


def mnist_forward(x, w1_p, b1_p, w2_p, b2_p, *, tile_b=1024):
    """x: (B,1,28,28) or (B,784), f32 or bf16 -> (B,10) bfloat16 log-probs.

    Weights must already be padded via prepare_params().
    """
    x2d = x.reshape(-1, IN_FEATURES)          # keep caller dtype; cast in-kernel
    B = x2d.shape[0]

    # --- batch tiling -------------------------------------------------------
    tile_b = max(16, (int(tile_b) // 16) * 16)      # multiple of 16 (bf16 rows)
    tile_b = min(tile_b, _round_up(B, 16))          # don't over-pad tiny batches
    if B > 32:
        # guarantee >= 2 grid steps: pipelining + v7x megacore sharding
        tile_b = min(tile_b, _round_up(pl.cdiv(B, 2), 16))
    n_tiles = pl.cdiv(B, tile_b)
    b_pad = n_tiles * tile_b
    if b_pad != B:
        # NOTE: pick batch sizes divisible by tile_b (powers of two) to skip
        # this copy of the dominant operand.
        x2d = jnp.pad(x2d, ((0, b_pad - B), (0, 0)))

    out_padded = pl.pallas_call(
        mnist_mlp_kernel,
        out_shape=jax.ShapeDtypeStruct((b_pad, PAD), jnp.bfloat16),
        grid=(n_tiles,),
        in_specs=[
            pl.BlockSpec((tile_b, IN_FEATURES), lambda i: (i, 0)),  # x tile
            pl.BlockSpec((IN_FEATURES, PAD), lambda i: (0, 0)),     # W1 (resident)
            pl.BlockSpec((1, PAD), lambda i: (0, 0)),               # b1
            pl.BlockSpec((PAD, PAD), lambda i: (0, 0)),             # W2
            pl.BlockSpec((1, PAD), lambda i: (0, 0)),               # b2
        ],
        out_specs=pl.BlockSpec((tile_b, PAD), lambda i: (i, 0)),
        compiler_params=pltpu.CompilerParams(
            dimension_semantics=("parallel",),
            vmem_limit_bytes=32 << 20,
        ),
    )(x2d, w1_p, b1_p, w2_p, b2_p)

    return out_padded[:B, :CLASSES]


def init_params(key):
    """nn.Linear default init: U(-1/sqrt(fan_in), +1/sqrt(fan_in))."""
    k1, k2, k3, k4 = jax.random.split(key, 4)
    bound1 = 1.0 / jnp.sqrt(float(IN_FEATURES))
    bound2 = 1.0 / jnp.sqrt(float(HIDDEN))
    w1 = jax.random.uniform(k1, (IN_FEATURES, HIDDEN), jnp.float32, -bound1, bound1)
    b1 = jax.random.uniform(k2, (1, HIDDEN), jnp.float32, -bound1, bound1)
    w2 = jax.random.uniform(k3, (HIDDEN, CLASSES), jnp.float32, -bound2, bound2)
    b2 = jax.random.uniform(k4, (1, CLASSES), jnp.float32, -bound2, bound2)
    return w1, b1, w2, b2


def reference_forward(x, w1, b1, w2, b2):
    """Pure-JAX f32 reference matching PyTorch semantics."""
    x2d = x.reshape(-1, IN_FEATURES).astype(jnp.float32)
    h = jnp.tanh(x2d @ w1 + b1)
    z = jnp.maximum(h @ w2 + b2, 0.0)
    return jax.nn.log_softmax(z, axis=1)


if __name__ == "__main__":
    key = jax.random.PRNGKey(0)
    kx, kp = jax.random.split(key)

    # B deliberately not a multiple of 16 nor of the tile to exercise padding
    # and the >=2-grid-step (megacore) path.
    B = 100
    x = jax.random.normal(kx, (B, 1, 28, 28), jnp.float32)
    w1, b1, w2, b2 = init_params(kp)

    # One-time weight padding/casting (hoisted out of the forward path).
    params = prepare_params(w1, b1, w2, b2)

    out = mnist_forward(x, *params, tile_b=1024)   # clamps to tile_b=64, grid=(2,)
    out = jax.block_until_ready(out)

    ref = reference_forward(x, w1, b1, w2, b2)
    assert out.shape == (B, CLASSES)
    out_f32 = out.astype(jnp.float32)
    assert bool(jnp.all(jnp.isfinite(out_f32))), "non-finite log-probs"
    # bf16 streaming of x/W1/h/W2 + bf16 output (f32 MXU accumulation)
    # -> loosened tolerance vs the f32 reference.
    assert jnp.allclose(out_f32, ref, atol=3e-2, rtol=0.0), "mismatch vs reference"

    print("KERNEL_OK")
</pallas_src>

<mosaic_0001>
module attributes {stable_mosaic.version = 11 : i64} {
  func.func @mnist_mlp_kernel(%arg0: i32, %arg1: memref<64x784xf32, #tpu.memory_space<vmem>>, %arg2: memref<784x128xbf16, #tpu.memory_space<vmem>>, %arg3: memref<1x128xf32, #tpu.memory_space<vmem>>, %arg4: memref<128x128xbf16, #tpu.memory_space<vmem>>, %arg5: memref<1x128xf32, #tpu.memory_space<vmem>>, %arg6: memref<64x128xbf16, #tpu.memory_space<vmem>>) attributes {dimension_semantics = [#tpu.dimension_semantics<parallel>], iteration_bounds = array<i64: 2>, scalar_prefetch = 0 : i64, scratch_operands = 0 : i64, tpu.core_type = #tpu.core_type<tc>, window_params = [{transform_indices = @transform_0, window_bounds = array<i64: 64, 784>}, {pipeline_mode = #tpu.pipeline_mode<synchronous>, transform_indices = @transform_1, window_bounds = array<i64: 784, 128>}, {pipeline_mode = #tpu.pipeline_mode<synchronous>, transform_indices = @transform_2, window_bounds = array<i64: 1, 128>}, {pipeline_mode = #tpu.pipeline_mode<synchronous>, transform_indices = @transform_3, window_bounds = array<i64: 128, 128>}, {pipeline_mode = #tpu.pipeline_mode<synchronous>, transform_indices = @transform_4, window_bounds = array<i64: 1, 128>}, {transform_indices = @transform_5, window_bounds = array<i64: 64, 128>}]} {
    %c0 = arith.constant 0 : index
    %c0_0 = arith.constant 0 : index
    %0 = vector.load %arg1[%c0, %c0_0] : memref<64x784xf32, #tpu.memory_space<vmem>>, vector<64x784xf32>
    %1 = arith.truncf %0 : vector<64x784xf32> to vector<64x784xbf16>
    %c0_1 = arith.constant 0 : index
    %c0_2 = arith.constant 0 : index
    %2 = vector.load %arg2[%c0_1, %c0_2] : memref<784x128xbf16, #tpu.memory_space<vmem>>, vector<784x128xbf16>
    %cst = arith.constant dense<0.000000e+00> : vector<64x128xf32>
    %3 = tpu.matmul %1, %2, %cst {dimension_numbers = #tpu.dot_dimension_numbers<[1], [0], [0], [1], [0, 0, 1, 1], [], []>} : vector<64x784xbf16>, vector<784x128xbf16>, vector<64x128xf32> -> vector<64x128xf32>
    %c0_3 = arith.constant 0 : index
    %c0_4 = arith.constant 0 : index
    %4 = vector.load %arg3[%c0_3, %c0_4] : memref<1x128xf32, #tpu.memory_space<vmem>>, vector<1x128xf32>
    %5 = vector.broadcast %4 : vector<1x128xf32> to vector<64x128xf32>
    %6 = arith.addf %3, %5 : vector<64x128xf32>
    %7 = math.tanh %6 : vector<64x128xf32>
    %8 = arith.truncf %7 : vector<64x128xf32> to vector<64x128xbf16>
    %c0_5 = arith.constant 0 : index
    %c0_6 = arith.constant 0 : index
    %9 = vector.load %arg4[%c0_5, %c0_6] : memref<128x128xbf16, #tpu.memory_space<vmem>>, vector<128x128xbf16>
    %cst_7 = arith.constant dense<0.000000e+00> : vector<64x128xf32>
    %10 = tpu.matmul %8, %9, %cst_7 {dimension_numbers = #tpu.dot_dimension_numbers<[1], [0], [0], [1], [0, 0, 1, 1], [], []>} : vector<64x128xbf16>, vector<128x128xbf16>, vector<64x128xf32> -> vector<64x128xf32>
    %c0_8 = arith.constant 0 : index
    %c0_9 = arith.constant 0 : index
    %11 = vector.load %arg5[%c0_8, %c0_9] : memref<1x128xf32, #tpu.memory_space<vmem>>, vector<1x128xf32>
    %12 = vector.broadcast %11 : vector<1x128xf32> to vector<64x128xf32>
    %13 = arith.addf %10, %12 : vector<64x128xf32>
    %cst_10 = arith.constant 0.000000e+00 : f32
    %14 = vector.broadcast %cst_10 : f32 to vector<64x128xf32>
    %15 = arith.maximumf %13, %14 : vector<64x128xf32>
    %16 = tpu.iota {dimensions = array<i32: 1>} : vector<64x128xi32>
    %c10_i32 = arith.constant 10 : i32
    %17 = vector.broadcast %c10_i32 : i32 to vector<64x128xi32>
    %18 = arith.cmpi slt, %16, %17 : vector<64x128xi32>
    %cst_11 = arith.constant 0xFF800000 : f32
    %19 = vector.broadcast %cst_11 : f32 to vector<64x128xf32>
    %20 = arith.select %18, %15, %19 : vector<64x128xi1>, vector<64x128xf32>
    %cst_12 = arith.constant dense<0xFF800000> : vector<64xf32>
    %21 = vector.multi_reduction <maximumf>, %20, %cst_12 [1] : vector<64x128xf32> to vector<64xf32>
    %22 = vector.shape_cast %21 : vector<64xf32> to vector<64x1xf32>
    %23 = vector.broadcast %22 : vector<64x1xf32> to vector<64x128xf32>
    %24 = arith.subf %20, %23 : vector<64x128xf32>
    %25 = math.exp %24 : vector<64x128xf32>
    %cst_13 = arith.constant dense<0.000000e+00> : vector<64xf32>
    %26 = vector.multi_reduction <add>, %25, %cst_13 [1] : vector<64x128xf32> to vector<64xf32>
    %27 = vector.shape_cast %26 : vector<64xf32> to vector<64x1xf32>
    %28 = math.log %27 : vector<64x1xf32>
    %29 = vector.broadcast %28 : vector<64x1xf32> to vector<64x128xf32>
    %30 = arith.subf %24, %29 : vector<64x128xf32>
    %31 = arith.truncf %30 : vector<64x128xf32> to vector<64x128xbf16>
    %c0_14 = arith.constant 0 : index
    %c0_15 = arith.constant 0 : index
    %32 = vector.load %arg6[%c0_14, %c0_15] : memref<64x128xbf16, #tpu.memory_space<vmem>>, vector<64x128xbf16>
    tpu.vector_store %arg6[%c0_14, %c0_15], %31 {strides = array<i32>} : memref<64x128xbf16, #tpu.memory_space<vmem>>, vector<64x128xbf16>,
    return
  }
  func.func @transform_0(%arg0: i32) -> (i32, i32) {
    %c0_i32 = arith.constant 0 : i32
    %c0_i32_0 = arith.constant 0 : i32
    return %arg0, %c0_i32 : i32, i32
  }
  func.func @transform_1(%arg0: i32) -> (i32, i32) {
    %c0_i32 = arith.constant 0 : i32
    %c0_i32_0 = arith.constant 0 : i32
    %c0_i32_1 = arith.constant 0 : i32
    return %c0_i32, %c0_i32_0 : i32, i32
  }
  func.func @transform_2(%arg0: i32) -> (i32, i32) {
    %c0_i32 = arith.constant 0 : i32
    %c0_i32_0 = arith.constant 0 : i32
    %c0_i32_1 = arith.constant 0 : i32
    return %c0_i32, %c0_i32_0 : i32, i32
  }
  func.func @transform_3(%arg0: i32) -> (i32, i32) {
    %c0_i32 = arith.constant 0 : i32
    %c0_i32_0 = arith.constant 0 : i32
    %c0_i32_1 = arith.constant 0 : i32
    return %c0_i32, %c0_i32_0 : i32, i32
  }
  func.func @transform_4(%arg0: i32) -> (i32, i32) {
    %c0_i32 = arith.constant 0 : i32
    %c0_i32_0 = arith.constant 0 : i32
    %c0_i32_1 = arith.constant 0 : i32
    return %c0_i32, %c0_i32_0 : i32, i32
  }
  func.func @transform_5(%arg0: i32) -> (i32, i32) {
    %c0_i32 = arith.constant 0 : i32
    %c0_i32_0 = arith.constant 0 : i32
    return %arg0, %c0_i32 : i32, i32
  }
}

</mosaic_0001>

<llo_original>
// kernel: tpu_custom_call.1
$region0: #{tpu_custom_call.1}
  #allocation0 [shape = 'u32[]', space=smem, size = 0x4, offset = 0x4, fixed_abs, tag = 'smem constant byte address 0x4 - core index']
  #allocation1 [shape = 'u32[144,128]{1,0:T(1,128)}', space=vmem, size = 0x12000, scoped, tag = 'internal scratch']
  %s0 = inlined_call_operand.vmem [shape: f32[128,784], index: 0, kind: input, shape index: {}]
  %s1 = inlined_call_operand.vmem [shape: bf16[784,128], index: 1, kind: input, shape index: {}]
  %s2 = inlined_call_operand.vmem [shape: f32[1,128], index: 2, kind: input, shape index: {}]
  %s3 = inlined_call_operand.vmem [shape: bf16[128,128], index: 3, kind: input, shape index: {}]
  %s4 = inlined_call_operand.vmem [shape: f32[1,128], index: 4, kind: input, shape index: {}]
  %s5 = inlined_call_operand.hbm [shape: bf16[128,128], index: 5, kind: output, shape index: {}]
  %s6 = sld [smem:[#allocation0]]
  $region53: #{tpu_custom_call.1} parent=0
    _
  %s8 = ssub.s32 1, %s6
  %s9 = scalar_select 0, %s8, %s6
  $region1: #{tpu_custom_call.1} parent=0
    #allocation2 [shape = 'u8[32768]{0}', space=vmem, size = 0x8000, scoped, tag = 'output window, operand 0']
    #allocation3 [shape = 's32[2]{0}', space=sflag, size = 0x8, scoped, tag = 'scoped memory for tpu_custom_call.1']
    %10 = vsyncpa [#allocation3], 0
    %s11 = scalar_lea.sflag [#allocation3], 1
    %12 = vsyncpa %s11, 0
    loop: start=0, step=1, limit=4
    $region2: #{tpu_custom_call.1} parent=1 // loop_pre_header
      _
    $region3: #{tpu_custom_call.1} parent=1 // loop_header
      %s14 = sphi 0, %s18
      %p15 = scmp.ge.s32.totalorder %s14, 4
      %s24 = sphi 0, %s26
      %s27 = sphi 0, %s24
      %s28 = sphi 0, %s27
      %s44 = sphi 0, %s28
      %s48 = sphi 0, %s48
      %s50 = sphi 0, %s48
      %s51 = sphi 0, %s50
      %s65 = sphi 0, %s51
      %s69 = sphi 0, %s69
      %s71 = sphi 0, %s69
      %s72 = sphi 0, %s71
      %s86 = sphi 0, %s72
      %s90 = sphi 0, %s90
      %s92 = sphi 0, %s90
      %s93 = sphi 0, %s92
      %s107 = sphi 0, %s93
      %s111 = sphi 0, %s111
      %s113 = sphi 0, %s111
      %s114 = sphi 0, %s113
      %s128 = sphi 0, %s114
      %s134 = sphi 0, %s136
      %s137 = sphi 0, %s134
      %s138 = sphi 0, %s137
      %s154 = sphi 0, %s138
    $region4: #{tpu_custom_call.1} parent=1 // loop_header_branch
      %17 = sbr.rel (%p15) target = $region8
    $region5: #{tpu_custom_call.1} parent=1 // loop_body
      %s19 = ssub.s32 %s14, 1
      %s20 = ssub.s32 %s14, 2
      %s21 = sadd.s32 %s14, 1
      %s22 = ssub.s32 %s14, %s21
      %p23 = scmp.eq.s32.totalorder %s22, 0
      %s25 = sadd.s32 %s24, 1
      %s26 = scalar_select %p23, %s24, %s25
      %p29 = pneg %p23
      %p30 = scmp.eq.s32.totalorder %s14, 1
      %p31 = por %p29, %p30
      %p32 = scmp.ne.s32.totalorder %s24, %s27
      %p33 = scmp.eq.s32.totalorder %s14, 0
      %p34 = por %p32, %p33
      %p35 = scmp.ne.s32.totalorder %s24, %s27
      %p36 = scmp.eq.s32.totalorder %s19, 1
      %p37 = por %p35, %p36
      %p38 = scmp.ne.s32.totalorder %s27, %s28
      %p39 = scmp.eq.s32.totalorder %s19, 0
      %p40 = por %p38, %p39
      %p41 = scmp.ne.s32.totalorder %s27, %s28
      %p42 = scmp.eq.s32.totalorder %s20, 1
      %p43 = por %p41, %p42
      %p45 = scmp.ne.s32.totalorder %s28, %s44
      %p46 = scmp.eq.s32.totalorder %s20, 0
      %p47 = por %p45, %p46
      %s49 = sadd.s32 %s48, 1
      %p52 = scmp.eq.s32.totalorder %s14, 1
      %p53 = scmp.ne.s32.totalorder %s48, %s50
      %p54 = scmp.eq.s32.totalorder %s14, 0
      %p55 = por %p53, %p54
      %p56 = scmp.ne.s32.totalorder %s48, %s50
      %p57 = scmp.eq.s32.totalorder %s19, 1
      %p58 = por %p56, %p57
      %p59 = scmp.ne.s32.totalorder %s50, %s51
      %p60 = scmp.eq.s32.totalorder %s19, 0
      %p61 = por %p59, %p60
      %p62 = scmp.ne.s32.totalorder %s50, %s51
      %p63 = scmp.eq.s32.totalorder %s20, 1
      %p64 = por %p62, %p63
      %p66 = scmp.ne.s32.totalorder %s51, %s65
      %p67 = scmp.eq.s32.totalorder %s20, 0
      %p68 = por %p66, %p67
      %s70 = sadd.s32 %s69, 1
      %p73 = scmp.eq.s32.totalorder %s14, 1
      %p74 = scmp.ne.s32.totalorder %s69, %s71
      %p75 = scmp.eq.s32.totalorder %s14, 0
      %p76 = por %p74, %p75
      %p77 = scmp.ne.s32.totalorder %s69, %s71
      %p78 = scmp.eq.s32.totalorder %s19, 1
      %p79 = por %p77, %p78
      %p80 = scmp.ne.s32.totalorder %s71, %s72
      %p81 = scmp.eq.s32.totalorder %s19, 0
      %p82 = por %p80, %p81
      %p83 = scmp.ne.s32.totalorder %s71, %s72
      %p84 = scmp.eq.s32.totalorder %s20, 1
      %p85 = por %p83, %p84
      %p87 = scmp.ne.s32.totalorder %s72, %s86
      %p88 = scmp.eq.s32.totalorder %s20, 0
      %p89 = por %p87, %p88
      %s91 = sadd.s32 %s90, 1
      %p94 = scmp.eq.s32.totalorder %s14, 1
      %p95 = scmp.ne.s32.totalorder %s90, %s92
      %p96 = scmp.eq.s32.totalorder %s14, 0
      %p97 = por %p95, %p96
      %p98 = scmp.ne.s32.totalorder %s90, %s92
      %p99 = scmp.eq.s32.totalorder %s19, 1
      %p100 = por %p98, %p99
      %p101 = scmp.ne.s32.totalorder %s92, %s93
      %p102 = scmp.eq.s32.totalorder %s19, 0
      %p103 = por %p101, %p102
      %p104 = scmp.ne.s32.totalorder %s92, %s93
      %p105 = scmp.eq.s32.totalorder %s20, 1
      %p106 = por %p104, %p105
      %p108 = scmp.ne.s32.totalorder %s93, %s107
      %p109 = scmp.eq.s32.totalorder %s20, 0
      %p110 = por %p108, %p109
      %s112 = sadd.s32 %s111, 1
      %p115 = scmp.eq.s32.totalorder %s14, 1
      %p116 = scmp.ne.s32.totalorder %s111, %s113
      %p117 = scmp.eq.s32.totalorder %s14, 0
      %p118 = por %p116, %p117
      %p119 = scmp.ne.s32.totalorder %s111, %s113
      %p120 = scmp.eq.s32.totalorder %s19, 1
      %p121 = por %p119, %p120
      %p122 = scmp.ne.s32.totalorder %s113, %s114
      %p123 = scmp.eq.s32.totalorder %s19, 0
      %p124 = por %p122, %p123
      %p125 = scmp.ne.s32.totalorder %s113, %s114
      %p126 = scmp.eq.s32.totalorder %s20, 1
      %p127 = por %p125, %p126
      %p129 = scmp.ne.s32.totalorder %s114, %s128
      %p130 = scmp.eq.s32.totalorder %s20, 0
      %p131 = por %p129, %p130
      %s132 = ssub.s32 %s14, %s21
      %p133 = scmp.eq.s32.totalorder %s132, 0
      %s135 = sadd.s32 %s134, 1
      %s136 = scalar_select %p133, %s134, %s135
      %p139 = pneg %p133
      %p140 = scmp.eq.s32.totalorder %s14, 1
      %p141 = por %p139, %p140
      %p142 = scmp.ne.s32.totalorder %s134, %s137
      %p143 = scmp.eq.s32.totalorder %s14, 0
      %p144 = por %p142, %p143
      %p145 = scmp.ne.s32.totalorder %s134, %s137
      %p146 = scmp.eq.s32.totalorder %s19, 1
      %p147 = por %p145, %p146
      %p148 = scmp.ne.s32.totalorder %s137, %s138
      %p149 = scmp.eq.s32.totalorder %s19, 0
      %p150 = por %p148, %p149
      %p151 = scmp.ne.s32.totalorder %s137, %s138
      %p152 = scmp.eq.s32.totalorder %s20, 1
      %p153 = por %p151, %p152
      %p155 = scmp.ne.s32.totalorder %s138, %s154
      %p156 = scmp.eq.s32.totalorder %s20, 0
      %p157 = por %p155, %p156
      %p158 = scmp.le.s32.totalorder 1, %s14
      %p159 = scmp.lt.s32.totalorder %s14, 3
      %p160 = pnand %p158, %p159
      %p161 = pneg %p160
      // Predicated region
      $region9: #{tpu_custom_call.1} parent=5 // pred_check
        _
      $region10: #{tpu_custom_call.1} parent=5 // pred_check_branch
        %163 = sbr.rel (%p160) target = $region12
      $region11: #{tpu_custom_call.1} parent=5 // pred_region
        %s164 = ssub.s32 %s14, 1
        // Predicated region
        $region13: #{tpu_custom_call.1} parent=11 // pred_check
          %p165 = pneg %p61
        $region14: #{tpu_custom_call.1} parent=11 // pred_check_branch
          %167 = sbr.rel (%p165) target = $region16
        $region15: #{tpu_custom_call.1} parent=11 // pred_region
          _
        $region16: #{tpu_custom_call.1} parent=11 // pred_fallthru
          _
        // Predicated region
        $region17: #{tpu_custom_call.1} parent=11 // pred_check
          %p168 = pneg %p82
        $region18: #{tpu_custom_call.1} parent=11 // pred_check_branch
          %170 = sbr.rel (%p168) target = $region20
        $region19: #{tpu_custom_call.1} parent=11 // pred_region
          _
        $region20: #{tpu_custom_call.1} parent=11 // pred_fallthru
          _
        // Predicated region
        $region21: #{tpu_custom_call.1} parent=11 // pred_check
          %p171 = pneg %p103
        $region22: #{tpu_custom_call.1} parent=11 // pred_check_branch
          %173 = sbr.rel (%p171) target = $region24
        $region23: #{tpu_custom_call.1} parent=11 // pred_region
          _
        $region24: #{tpu_custom_call.1} parent=11 // pred_fallthru
          _
        // Predicated region
        $region25: #{tpu_custom_call.1} parent=11 // pred_check
          %p174 = pneg %p124
        $region26: #{tpu_custom_call.1} parent=11 // pred_check_branch
          %176 = sbr.rel (%p174) target = $region28
        $region27: #{tpu_custom_call.1} parent=11 // pred_region
          _
        $region28: #{tpu_custom_call.1} parent=11 // pred_fallthru
          _
      $region12: #{tpu_custom_call.1} parent=5 // pred_fallthru
        _
      %p177 = scmp.lt.s32.totalorder %s14, 2
      // Predicated region
      $region29: #{tpu_custom_call.1} parent=5 // pred_check
        %p178 = pneg %p177
      $region30: #{tpu_custom_call.1} parent=5 // pred_check_branch
        %180 = sbr.rel (%p178) target = $region32
      $region31: #{tpu_custom_call.1} parent=5 // pred_region
        // Predicated region
        $region33: #{tpu_custom_call.1} parent=31 // pred_check
          %p181 = pneg %p34
        $region34: #{tpu_custom_call.1} parent=31 // pred_check_branch
          %183 = sbr.rel (%p181) target = $region36
        $region35: #{tpu_custom_call.1} parent=31 // pred_region
          %s184 = smul.u32 8, %s14
          %p185 = scmp.lt.s32.totalorder %s184, 15
          %s186 = scalar_select %p185, %s184, 15
          %s187 = smul.addr %s186, 7
          %s188 = smul.addr %s187, 8
          %s189 = scalar_lea.vmem %s0, %s188
          %s190 = smul.u32 8, %s14
        $region36: #{tpu_custom_call.1} parent=31 // pred_fallthru
          _
      $region32: #{tpu_custom_call.1} parent=5 // pred_fallthru
        _
      %p191 = scmp.le.s32.totalorder 1, %s14
      %p192 = scmp.lt.s32.totalorder %s14, 3
      %p193 = pnand %p191, %p192
      %p194 = pneg %p193
      // Predicated region
      $region37: #{tpu_custom_call.1} parent=5 // pred_check
        _
      $region38: #{tpu_custom_call.1} parent=5 // pred_check_branch
        %196 = sbr.rel (%p193) target = $region40
      $region39: #{tpu_custom_call.1} parent=5 // pred_region
        %s197 = ssub.s32 %s14, 1
        %s198 = smul.u32 8, %s19
        %p199 = scmp.lt.s32.totalorder %s198, 15
        %s200 = scalar_select %p199, %s198, 15
        %s201 = smul.addr %s200, 7
        %s202 = smul.addr %s201, 8
        %s203 = scalar_lea.vmem %s0, %s202
        %p204 = pneg %p40
        %p205 = pneg %p37
        %p206 = pneg %p61
        %p207 = pneg %p58
        %p208 = pneg %p82
        %p209 = pneg %p79
        %p210 = pneg %p103
        %p211 = pneg %p100
        %p212 = pneg %p124
        %p213 = pneg %p121
        %p214 = pneg %p150
        %p215 = pneg %p147
        %s216 = sand.u32 %s137, 1
        %s217 = scalar_lea.sflag [#allocation3], %s216
        %s218 = sand.u32 %s137, 1
        %s219 = smul.addr %s218, 32
        %s220 = scalar_lea.vmem [#allocation2], %s219
        %s221 = smul.u32 8, %s19
        %p222 = scmp.lt.s32.totalorder %s221, 15
        %s223 = scalar_select %p222, %s221, 15
        %s224 = smul.addr %s223, 7
        %s225 = smul.addr %s224, 8
        %s226 = scalar_lea.vmem %s0, %s225
        %s227 = smul.u32 8, %s19
        %s228 = smul.u32 8, %s19
        %v230 = vld [vmem:[%s226] sm:$0xff]
        %v231 = vld [vmem:[%s226 + $0x8] sm:$0xff]
        %v232 = vld [vmem:[%s226 + $0x10] sm:$0xff]
        %v233 = vld [vmem:[%s226 + $0x18] sm:$0xff]
        %v234 = vld [vmem:[%s226 + $0x20] sm:$0xff]
        %v235 = vld [vmem:[%s226 + $0x28] sm:$0xff]
        %v236 = vld [vmem:[%s226 + $0x30] sm:$0xff]
        %v237 = vld [vmem:[%s226 + $0x38] sm:$0xff]
        %v238 = vld [vmem:[%s226 + $0x40] sm:$0xff]
        %v239 = vld [vmem:[%s226 + $0x48] sm:$0xff]
        %v240 = vld [vmem:[%s226 + $0x50] sm:$0xff]
        %v241 = vld [vmem:[%s226 + $0x58] sm:$0xff]
        %v242 = vld [vmem:[%s226 + $0x60] sm:$0xff]
        %v243 = vld [vmem:[%s226 + $0x68] sm:$0xff]
        %v244 = vld [vmem:[%s226 + $0x70] sm:$0xff]
        %v245 = vld [vmem:[%s226 + $0x78] sm:$0xff]
        %v246 = vld [vmem:[%s226 + $0x80] sm:$0xff]
        %v247 = vld [vmem:[%s226 + $0x88] sm:$0xff]
        %v248 = vld [vmem:[%s226 + $0x90] sm:$0xff]
        %v249 = vld [vmem:[%s226 + $0x98] sm:$0xff]
        %v250 = vld [vmem:[%s226 + $0xa0] sm:$0xff]
        %v251 = vld [vmem:[%s226 + $0xa8] sm:$0xff]
        %v252 = vld [vmem:[%s226 + $0xb0] sm:$0xff]
        %v253 = vld [vmem:[%s226 + $0xb8] sm:$0xff]
        %v254 = vld [vmem:[%s226 + $0xc0] sm:$0xff]
        %v255 = vld [vmem:[%s226 + $0xc8] sm:$0xff]
        %v256 = vld [vmem:[%s226 + $0xd0] sm:$0xff]
        %v257 = vld [vmem:[%s226 + $0xd8] sm:$0xff]
        %v258 = vld [vmem:[%s226 + $0xe0] sm:$0xff]
        %v259 = vld [vmem:[%s226 + $0xe8] sm:$0xff]
        %v260 = vld [vmem:[%s226 + $0xf0] sm:$0xff]
        %v261 = vld [vmem:[%s226 + $0xf8] sm:$0xff]
        %v262 = vld [vmem:[%s226 + $0x100] sm:$0xff]
        %v263 = vld [vmem:[%s226 + $0x108] sm:$0xff]
        %v264 = vld [vmem:[%s226 + $0x110] sm:$0xff]
        %v265 = vld [vmem:[%s226 + $0x118] sm:$0xff]
        %v266 = vld [vmem:[%s226 + $0x120] sm:$0xff]
        %v267 = vld [vmem:[%s226 + $0x128] sm:$0xff]
        %v268 = vld [vmem:[%s226 + $0x130] sm:$0xff]
        %v269 = vld [vmem:[%s226 + $0x138] sm:$0xff]
        %v270 = vld [vmem:[%s226 + $0x140] sm:$0xff]
        %v271 = vld [vmem:[%s226 + $0x148] sm:$0xff]
        %v272 = vld [vmem:[%s226 + $0x150] sm:$0xff]
        %v273 = vld [vmem:[%s226 + $0x158] sm:$0xff]
        %v274 = vld [vmem:[%s226 + $0x160] sm:$0xff]
        %v275 = vld [vmem:[%s226 + $0x168] sm:$0xff]
        %v276 = vld [vmem:[%s226 + $0x170] sm:$0xff]
        %v277 = vld [vmem:[%s226 + $0x178] sm:$0xff]
        %v278 = vld [vmem:[%s226 + $0x180] sm:$0xff]
        %v279 = vld [vmem:[%s226 + $0x188] sm:$0xff]
        %v280 = vld [vmem:[%s226 + $0x190] sm:$0xff]
        %v281 = vld [vmem:[%s226 + $0x198] sm:$0xff]
        %v282 = vld [vmem:[%s226 + $0x1a0] sm:$0xff]
        %v283 = vld [vmem:[%s226 + $0x1a8] sm:$0xff]
        %v284 = vld [vmem:[%s226 + $0x1b0] sm:$0xff]
        %v285 = vld [vmem:[%s226 + $0x1b8] sm:$0xff]
        %v286 = vpack.c.bf16 %v237, %v230
        %v287 = vpack.c.bf16 %v238, %v231
        %v288 = vpack.c.bf16 %v239, %v232
        %v289 = vpack.c.bf16 %v240, %v233
        %v290 = vpack.c.bf16 %v241, %v234
        %v291 = vpack.c.bf16 %v242, %v235
        %v292 = vpack.c.bf16 %v243, %v236
        %v293 = vpack.c.bf16 %v251, %v244
        %v294 = vpack.c.bf16 %v252, %v245
        %v295 = vpack.c.bf16 %v253, %v246
        %v296 = vpack.c.bf16 %v254, %v247
        %v297 = vpack.c.bf16 %v255, %v248
        %v298 = vpack.c.bf16 %v256, %v249
        %v299 = vpack.c.bf16 %v257, %v250
        %v300 = vpack.c.bf16 %v265, %v258
        %v301 = vpack.c.bf16 %v266, %v259
        %v302 = vpack.c.bf16 %v267, %v260
        %v303 = vpack.c.bf16 %v268, %v261
        %v304 = vpack.c.bf16 %v269, %v262
        %v305 = vpack.c.bf16 %v270, %v263
        %v306 = vpack.c.bf16 %v271, %v264
        %v307 = vpack.c.bf16 %v279, %v272
        %v308 = vpack.c.bf16 %v280, %v273
        %v309 = vpack.c.bf16 %v281, %v274
        %v310 = vpack.c.bf16 %v282, %v275
        %v311 = vpack.c.bf16 %v283, %v276
        %v312 = vpack.c.bf16 %v284, %v277
        %v313 = vpack.c.bf16 %v285, %v278
        %v314 = vld [vmem:[%s1] sm:$0xf]
        %v315 = vld [vmem:[%s1 + $0x4] sm:$0xf]
        %v316 = vld [vmem:[%s1 + $0x8] sm:$0xf]
        %v317 = vld [vmem:[%s1 + $0xc] sm:$0xf]
        %v318 = vld [vmem:[%s1 + $0x10] sm:$0xf]
        %v319 = vld [vmem:[%s1 + $0x14] sm:$0xf]
        %v320 = vld [vmem:[%s1 + $0x18] sm:$0xf]
        %v321 = vld [vmem:[%s1 + $0x1c] sm:$0xf]
        %v322 = vld [vmem:[%s1 + $0x20] sm:$0xf]
        %v323 = vld [vmem:[%s1 + $0x24] sm:$0xf]
        %v324 = vld [vmem:[%s1 + $0x28] sm:$0xf]
        %v325 = vld [vmem:[%s1 + $0x2c] sm:$0xf]
        %v326 = vld [vmem:[%s1 + $0x30] sm:$0xf]
        %v327 = vld [vmem:[%s1 + $0x34] sm:$0xf]
        %v328 = vld [vmem:[%s1 + $0x38] sm:$0xf]
        %v329 = vld [vmem:[%s1 + $0x3c] sm:$0xf]
        %v330 = vld [vmem:[%s1 + $0x40] sm:$0xf]
        %v331 = vld [vmem:[%s1 + $0x44] sm:$0xf]
        %v332 = vld [vmem:[%s1 + $0x48] sm:$0xf]
        %v333 = vld [vmem:[%s1 + $0x4c] sm:$0xf]
        %v334 = vld [vmem:[%s1 + $0x50] sm:$0xf]
        %v335 = vld [vmem:[%s1 + $0x54] sm:$0xf]
        %v336 = vld [vmem:[%s1 + $0x58] sm:$0xf]
        %v337 = vld [vmem:[%s1 + $0x5c] sm:$0xf]
        %v338 = vld [vmem:[%s1 + $0x60] sm:$0xf]
        %v339 = vld [vmem:[%s1 + $0x64] sm:$0xf]
        %v340 = vld [vmem:[%s1 + $0x68] sm:$0xf]
        %v341 = vld [vmem:[%s1 + $0x6c] sm:$0xf]
        %v342 = vld [vmem:[%s1 + $0x70] sm:$0xf]
        %v343 = vld [vmem:[%s1 + $0x74] sm:$0xf]
        %v344 = vld [vmem:[%s1 + $0x78] sm:$0xf]
        %v345 = vld [vmem:[%s1 + $0x7c] sm:$0xf]
        %v346 = vld [vmem:[%s1 + $0x80] sm:$0xf]
        %v347 = vld [vmem:[%s1 + $0x84] sm:$0xf]
        %v348 = vld [vmem:[%s1 + $0x88] sm:$0xf]
        %v349 = vld [vmem:[%s1 + $0x8c] sm:$0xf]
        %v350 = vld [vmem:[%s1 + $0x90] sm:$0xf]
        %v351 = vld [vmem:[%s1 + $0x94] sm:$0xf]
        %v352 = vld [vmem:[%s1 + $0x98] sm:$0xf]
        %v353 = vld [vmem:[%s1 + $0x9c] sm:$0xf]
        %v354 = vld [vmem:[%s1 + $0xa0] sm:$0xf]
        %v355 = vld [vmem:[%s1 + $0xa4] sm:$0xf]
        %v356 = vld [vmem:[%s1 + $0xa8] sm:$0xf]
        %v357 = vld [vmem:[%s1 + $0xac] sm:$0xf]
        %v358 = vld [vmem:[%s1 + $0xb0] sm:$0xf]
        %v359 = vld [vmem:[%s1 + $0xb4] sm:$0xf]
        %v360 = vld [vmem:[%s1 + $0xb8] sm:$0xf]
        %v361 = vld [vmem:[%s1 + $0xbc] sm:$0xf]
        %v362 = vld [vmem:[%s1 + $0xc0] sm:$0xf]
        %v363 = vld [vmem:[%s1 + $0xc4] sm:$0xf]
        %v364 = vld [vmem:[%s1 + $0xc8] sm:$0xf]
        %v365 = vld [vmem:[%s1 + $0xcc] sm:$0xf]
        %v366 = vld [vmem:[%s1 + $0xd0] sm:$0xf]
        %v367 = vld [vmem:[%s1 + $0xd4] sm:$0xf]
        %v368 = vld [vmem:[%s1 + $0xd8] sm:$0xf]
        %v369 = vld [vmem:[%s1 + $0xdc] sm:$0xf]
        %v370 = vld [vmem:[%s1 + $0xe0] sm:$0xf]
        %v371 = vld [vmem:[%s1 + $0xe4] sm:$0xf]
        %v372 = vld [vmem:[%s1 + $0xe8] sm:$0xf]
        %v373 = vld [vmem:[%s1 + $0xec] sm:$0xf]
        %v374 = vld [vmem:[%s1 + $0xf0] sm:$0xf]
        %v375 = vld [vmem:[%s1 + $0xf4] sm:$0xf]
        %v376 = vld [vmem:[%s1 + $0xf8] sm:$0xf]
        %v377 = vld [vmem:[%s1 + $0xfc] sm:$0xf]
        %v378 = vld [vmem:[%s1 + $0x100] sm:$0xf]
        %v379 = vld [vmem:[%s1 + $0x104] sm:$0xf]
        %v380 = vld [vmem:[%s1 + $0x108] sm:$0xf]
        %v381 = vld [vmem:[%s1 + $0x10c] sm:$0xf]
        %v382 = vld [vmem:[%s1 + $0x110] sm:$0xf]
        %v383 = vld [vmem:[%s1 + $0x114] sm:$0xf]
        %v384 = vld [vmem:[%s1 + $0x118] sm:$0xf]
        %v385 = vld [vmem:[%s1 + $0x11c] sm:$0xf]
        %v386 = vld [vmem:[%s1 + $0x120] sm:$0xf]
        %v387 = vld [vmem:[%s1 + $0x124] sm:$0xf]
        %v388 = vld [vmem:[%s1 + $0x128] sm:$0xf]
        %v389 = vld [vmem:[%s1 + $0x12c] sm:$0xf]
        %v390 = vld [vmem:[%s1 + $0x130] sm:$0xf]
        %v391 = vld [vmem:[%s1 + $0x134] sm:$0xf]
        %v392 = vld [vmem:[%s1 + $0x138] sm:$0xf]
        %v393 = vld [vmem:[%s1 + $0x13c] sm:$0xf]
        %v394 = vld [vmem:[%s1 + $0x140] sm:$0xf]
        %v395 = vld [vmem:[%s1 + $0x144] sm:$0xf]
        %v396 = vld [vmem:[%s1 + $0x148] sm:$0xf]
        %v397 = vld [vmem:[%s1 + $0x14c] sm:$0xf]
        %v398 = vld [vmem:[%s1 + $0x150] sm:$0xf]
        %v399 = vld [vmem:[%s1 + $0x154] sm:$0xf]
        %v400 = vld [vmem:[%s1 + $0x158] sm:$0xf]
        %v401 = vld [vmem:[%s1 + $0x15c] sm:$0xf]
        %v402 = vld [vmem:[%s1 + $0x160] sm:$0xf]
        %v403 = vld [vmem:[%s1 + $0x164] sm:$0xf]
        %v404 = vld [vmem:[%s1 + $0x168] sm:$0xf]
        %v405 = vld [vmem:[%s1 + $0x16c] sm:$0xf]
        %v406 = vld [vmem:[%s1 + $0x170] sm:$0xf]
        %v407 = vld [vmem:[%s1 + $0x174] sm:$0xf]
        %v408 = vld [vmem:[%s1 + $0x178] sm:$0xf]
        %v409 = vld [vmem:[%s1 + $0x17c] sm:$0xf]
        %v410 = vld [vmem:[%s1 + $0x180] sm:$0xf]
        %v411 = vld [vmem:[%s1 + $0x184] sm:$0xf]
        %v412 = vld [vmem:[%s2] sm:$0x1]
        %v414 = vlaneseq
        %v415 = vshrl.u32 %v414, 7
        %v416 = vsub.s32 0, %v415
        %v417 = vrot.slane %v412, %v416
        %v517 = vunpack.c.l.b16 %v314
        %v518 = vunpack.c.l.b16 %v315
        %v519 = vunpack.c.l.b16 %v316
        %v520 = vunpack.c.l.b16 %v317
        %v521 = vunpack.c.l.b16 %v318
        %v522 = vunpack.c.l.b16 %v319
        %v523 = vunpack.c.l.b16 %v320
        %v524 = vunpack.c.l.b16 %v321
        %v525 = vunpack.c.l.b16 %v322
        %v526 = vunpack.c.l.b16 %v323
        %v527 = vunpack.c.l.b16 %v324
        %v528 = vunpack.c.l.b16 %v325
        %v529 = vunpack.c.l.b16 %v326
        %v530 = vunpack.c.l.b16 %v327
        %v531 = vunpack.c.l.b16 %v328
        %v532 = vunpack.c.l.b16 %v329
        %v533 = vunpack.c.l.b16 %v330
        %v534 = vunpack.c.l.b16 %v331
        %v535 = vunpack.c.l.b16 %v332
        %v536 = vunpack.c.l.b16 %v333
        %v537 = vunpack.c.l.b16 %v334
        %v538 = vunpack.c.l.b16 %v335
        %v539 = vunpack.c.l.b16 %v336
        %v540 = vunpack.c.l.b16 %v337
        %v541 = vunpack.c.l.b16 %v338
        %v542 = vunpack.c.l.b16 %v339
        %v543 = vunpack.c.l.b16 %v340
        %v544 = vunpack.c.l.b16 %v341
        %v545 = vunpack.c.l.b16 %v342
        %v546 = vunpack.c.l.b16 %v343
        %v547 = vunpack.c.l.b16 %v344
        %v548 = vunpack.c.l.b16 %v345
        %v549 = vunpack.c.l.b16 %v346
        %v550 = vunpack.c.l.b16 %v347
        %v551 = vunpack.c.l.b16 %v348
        %v552 = vunpack.c.l.b16 %v349
        %v553 = vunpack.c.l.b16 %v350
        %v554 = vunpack.c.l.b16 %v351
        %v555 = vunpack.c.l.b16 %v352
        %v556 = vunpack.c.l.b16 %v353
        %v557 = vunpack.c.l.b16 %v354
        %v558 = vunpack.c.l.b16 %v355
        %v559 = vunpack.c.l.b16 %v356
        %v560 = vunpack.c.l.b16 %v357
        %v561 = vunpack.c.l.b16 %v358
        %v562 = vunpack.c.l.b16 %v359
        %v563 = vunpack.c.l.b16 %v360
        %v564 = vunpack.c.l.b16 %v361
        %v565 = vunpack.c.l.b16 %v362
        %v566 = vunpack.c.l.b16 %v363
        %v567 = vunpack.c.l.b16 %v364
        %v568 = vunpack.c.l.b16 %v365
        %v569 = vunpack.c.l.b16 %v366
        %v570 = vunpack.c.l.b16 %v367
        %v571 = vunpack.c.l.b16 %v368
        %v572 = vunpack.c.l.b16 %v369
        %v573 = vunpack.c.l.b16 %v370
        %v574 = vunpack.c.l.b16 %v371
        %v575 = vunpack.c.l.b16 %v372
        %v576 = vunpack.c.l.b16 %v373
        %v577 = vunpack.c.l.b16 %v374
        %v578 = vunpack.c.l.b16 %v375
        %v579 = vunpack.c.l.b16 %v376
        %v580 = vunpack.c.l.b16 %v377
        %v581 = vunpack.c.l.b16 %v378
        %v582 = vunpack.c.l.b16 %v379
        %v583 = vunpack.c.l.b16 %v380
        %v584 = vunpack.c.l.b16 %v381
        %v585 = vunpack.c.l.b16 %v382
        %v586 = vunpack.c.l.b16 %v383
        %v587 = vunpack.c.l.b16 %v384
        %v588 = vunpack.c.l.b16 %v385
        %v589 = vunpack.c.l.b16 %v386
        %v590 = vunpack.c.l.b16 %v387
        %v591 = vunpack.c.l.b16 %v388
        %v592 = vunpack.c.l.b16 %v389
        %v593 = vunpack.c.l.b16 %v390
        %v594 = vunpack.c.l.b16 %v391
        %v595 = vunpack.c.l.b16 %v392
        %v596 = vunpack.c.l.b16 %v393
        %v597 = vunpack.c.l.b16 %v394
        %v598 = vunpack.c.l.b16 %v395
        %v599 = vunpack.c.l.b16 %v396
        %v600 = vunpack.c.l.b16 %v397
        %v601 = vunpack.c.l.b16 %v398
        %v602 = vunpack.c.l.b16 %v399
        %v603 = vunpack.c.l.b16 %v400
        %v604 = vunpack.c.l.b16 %v401
        %v605 = vunpack.c.l.b16 %v402
        %v606 = vunpack.c.l.b16 %v403
        %v607 = vunpack.c.l.b16 %v404
        %v608 = vunpack.c.l.b16 %v405
        %v609 = vunpack.c.l.b16 %v406
        %v610 = vunpack.c.l.b16 %v407
        %v611 = vunpack.c.l.b16 %v408
        %v612 = vunpack.c.l.b16 %v409
        %v613 = vunpack.c.l.b16 %v410
        %v614 = vunpack.c.l.b16 %v411
        %v615 = vpack.c.b16 %v518, %v517
        %v616 = vpack.c.b16 %v520, %v519
        %v617 = vpack.c.b16 %v522, %v521
        %v618 = vpack.c.b16 %v524, %v523
        %v619 = vpack.c.b16 %v526, %v525
        %v620 = vpack.c.b16 %v528, %v527
        %v621 = vpack.c.b16 %v530, %v529
        %v622 = vpack.c.b16 %v532, %v531
        %v623 = vpack.c.b16 %v534, %v533
        %v624 = vpack.c.b16 %v536, %v535
        %v625 = vpack.c.b16 %v538, %v537
        %v626 = vpack.c.b16 %v540, %v539
        %v627 = vpack.c.b16 %v542, %v541
        %v628 = vpack.c.b16 %v544, %v543
        %v629 = vpack.c.b16 %v546, %v545
        %v630 = vpack.c.b16 %v548, %v547
        %v631 = vpack.c.b16 %v550, %v549
        %v632 = vpack.c.b16 %v552, %v551
        %v633 = vpack.c.b16 %v554, %v553
        %v634 = vpack.c.b16 %v556, %v555
        %v635 = vpack.c.b16 %v558, %v557
        %v636 = vpack.c.b16 %v560, %v559
        %v637 = vpack.c.b16 %v562, %v561
        %v638 = vpack.c.b16 %v564, %v563
        %v639 = vpack.c.b16 %v566, %v565
        %v640 = vpack.c.b16 %v568, %v567
        %v641 = vpack.c.b16 %v570, %v569
        %v642 = vpack.c.b16 %v572, %v571
        %v643 = vpack.c.b16 %v574, %v573
        %v644 = vpack.c.b16 %v576, %v575
        %v645 = vpack.c.b16 %v578, %v577
        %v646 = vpack.c.b16 %v580, %v579
        %v647 = vpack.c.b16 %v582, %v581
        %v648 = vpack.c.b16 %v584, %v583
        %v649 = vpack.c.b16 %v586, %v585
        %v650 = vpack.c.b16 %v588, %v587
        %v651 = vpack.c.b16 %v590, %v589
        %v652 = vpack.c.b16 %v592, %v591
        %v653 = vpack.c.b16 %v594, %v593
        %v654 = vpack.c.b16 %v596, %v595
        %v655 = vpack.c.b16 %v598, %v597
        %v656 = vpack.c.b16 %v600, %v599
        %v657 = vpack.c.b16 %v602, %v601
        %v658 = vpack.c.b16 %v604, %v603
        %v659 = vpack.c.b16 %v606, %v605
        %v660 = vpack.c.b16 %v608, %v607
        %v661 = vpack.c.b16 %v610, %v609
        %v662 = vpack.c.b16 %v612, %v611
        %v663 = vpack.c.b16 %v614, %v613
        %vm713 = vcmask 130048
        %v715 = vsel %vm713, %v292, 0
        %v718 = vsel %vm713, %v299, 0
        %v721 = vsel %vm713, %v306, 0
        %v724 = vsel %vm713, %v313, 0
        %726 = vmatprep.subr.bf16.mxu0 0
        %727 = vmatpush1.bf16.msra.mxu0 %v615
        %728 = vmatprep.subr.bf16.mxu0 0
        %729 = vmatpush1.bf16.msra.mxu0 %v616
        %730 = vmatprep.subr.bf16.mxu0 0
        %731 = vmatpush1.bf16.msra.mxu0 %v617
        %732 = vmatprep.subr.bf16.mxu0 0
        %733 = vmatpush1.bf16.msra.mxu0 %v618
        %734 = vmatprep.subr.bf16.mxu0 0
        %735 = vmatpush1.bf16.msra.mxu0 %v619
        %736 = vmatprep.subr.bf16.mxu0 0
        %737 = vmatpush1.bf16.msra.mxu0 %v620
        %738 = vmatprep.subr.bf16.mxu0 0
        %739 = vmatpush1.bf16.msra.mxu0 %v621
        %740 = vmatprep.subr.bf16.mxu0 0
        %741 = vmatpush1.bf16.msra.mxu0 %v622
        %742 = vmatprep.subr.bf16.mxu0 0
        %743 = vmatpush1.bf16.msra.mxu0 %v623
        %744 = vmatprep.subr.bf16.mxu0 0
        %745 = vmatpush1.bf16.msra.mxu0 %v624
        %746 = vmatprep.subr.bf16.mxu0 0
        %747 = vmatpush1.bf16.msra.mxu0 %v625
        %748 = vmatprep.subr.bf16.mxu0 0
        %749 = vmatpush1.bf16.msra.mxu0 %v626
        %750 = vmatprep.subr.bf16.mxu0 0
        %751 = vmatpush1.bf16.msra.mxu0 %v627
        %752 = vmatprep.subr.bf16.mxu0 0
        %753 = vmatpush1.bf16.msra.mxu0 %v628
        %754 = vmatprep.subr.bf16.mxu0 0
        %755 = vmatpush1.bf16.msra.mxu0 %v629
        %756 = vmatprep.subr.bf16.mxu0 0
        %757 = vmatpush1.bf16.msra.mxu0 %v630
        %758 = vmatprep.mubr.bf16.mxu0 %v287
        %759 = vmatmul.mubr.bf16.gmra.mrb[0].mxu0 %v286
        %v760 = vpop.f32.mrb[0].mxu0
        %v761 = vadd.f32 %v417, %v760
        %v762 = vpop.f32.mrb[0].mxu0
        %v763 = vpop.f32.mrb[0].mxu0
        %v764 = vadd.f32 %v417, %v763
        %v765 = vpop.f32.mrb[0].mxu0
        %766 = vmatprep.mubr.bf16.mxu0 %v294
        %767 = vmatmul.mubr.bf16.gmra.mrb[0].mxu0 %v293
        %v768 = vpop.f32.mrb[0].mxu0
        %v769 = vadd.f32 %v417, %v768
        %v770 = vpop.f32.mrb[0].mxu0
        %v771 = vpop.f32.mrb[0].mxu0
        %v772 = vadd.f32 %v417, %v771
        %v773 = vpop.f32.mrb[0].mxu0
        %774 = vmatprep.mubr.bf16.mxu0 %v301
        %775 = vmatmul.mubr.bf16.gmra.mrb[0].mxu0 %v300
        %v776 = vpop.f32.mrb[0].mxu0
        %v777 = vadd.f32 %v417, %v776
        %v778 = vpop.f32.mrb[0].mxu0
        %v779 = vpop.f32.mrb[0].mxu0
        %v780 = vadd.f32 %v417, %v779
        %v781 = vpop.f32.mrb[0].mxu0
        %782 = vmatprep.mubr.bf16.mxu0 %v308
        %783 = vmatmul.mubr.bf16.gmra.mrb[0].mxu0 %v307
        %v784 = vpop.f32.mrb[0].mxu0
        %v785 = vadd.f32 %v417, %v784
        %v786 = vpop.f32.mrb[0].mxu0
        %v787 = vpop.f32.mrb[0].mxu0
        %v788 = vadd.f32 %v417, %v787
        %v789 = vpop.f32.mrb[0].mxu0
        %790 = vdwg.mxu0
        %791 = vmatprep.subr.bf16.mxu0 0
        %792 = vmatpush1.bf16.msra.mxu0 %v631
        %793 = vmatprep.subr.bf16.mxu0 0
        %794 = vmatpush1.bf16.msra.mxu0 %v632
        %795 = vmatprep.subr.bf16.mxu0 0
        %796 = vmatpush1.bf16.msra.mxu0 %v633
        %797 = vmatprep.subr.bf16.mxu0 0
        %798 = vmatpush1.bf16.msra.mxu0 %v634
        %799 = vmatprep.subr.bf16.mxu0 0
        %800 = vmatpush1.bf16.msra.mxu0 %v635
        %801 = vmatprep.subr.bf16.mxu0 0
        %802 = vmatpush1.bf16.msra.mxu0 %v636
        %803 = vmatprep.subr.bf16.mxu0 0
        %804 = vmatpush1.bf16.msra.mxu0 %v637
        %805 = vmatprep.subr.bf16.mxu0 0
        %806 = vmatpush1.bf16.msra.mxu0 %v638
        %807 = vmatprep.subr.bf16.mxu0 0
        %808 = vmatpush1.bf16.msra.mxu0 %v639
        %809 = vmatprep.subr.bf16.mxu0 0
        %810 = vmatpush1.bf16.msra.mxu0 %v640
        %811 = vmatprep.subr.bf16.mxu0 0
        %812 = vmatpush1.bf16.msra.mxu0 %v641
        %813 = vmatprep.subr.bf16.mxu0 0
        %814 = vmatpush1.bf16.msra.mxu0 %v642
        %815 = vmatprep.subr.bf16.mxu0 0
        %816 = vmatpush1.bf16.msra.mxu0 %v643
        %817 = vmatprep.subr.bf16.mxu0 0
        %818 = vmatpush1.bf16.msra.mxu0 %v644
        %819 = vmatprep.subr.bf16.mxu0 0
        %820 = vmatpush1.bf16.msra.mxu0 %v645
        %821 = vmatprep.subr.bf16.mxu0 0
        %822 = vmatpush1.bf16.msra.mxu0 %v646
        %823 = vmatprep.mubr.bf16.mxu0 %v289
        %824 = vmatmul.mubr.bf16.gmra.mrb[0].mxu0 %v288
        %v825 = vpop.f32.mrb[0].mxu0
        %v826 = vadd.f32 %v761, %v825
        %v827 = vpop.f32.mrb[0].mxu0
        %v828 = vpop.f32.mrb[0].mxu0
        %v829 = vadd.f32 %v764, %v828
        %v830 = vpop.f32.mrb[0].mxu0
        %831 = vmatprep.mubr.bf16.mxu0 %v296
        %832 = vmatmul.mubr.bf16.gmra.mrb[0].mxu0 %v295
        %v833 = vpop.f32.mrb[0].mxu0
        %v834 = vadd.f32 %v769, %v833
        %v835 = vpop.f32.mrb[0].mxu0
        %v836 = vpop.f32.mrb[0].mxu0
        %v837 = vadd.f32 %v772, %v836
        %v838 = vpop.f32.mrb[0].mxu0
        %839 = vmatprep.mubr.bf16.mxu0 %v303
        %840 = vmatmul.mubr.bf16.gmra.mrb[0].mxu0 %v302
        %v841 = vpop.f32.mrb[0].mxu0
        %v842 = vadd.f32 %v777, %v841
        %v843 = vpop.f32.mrb[0].mxu0
        %v844 = vpop.f32.mrb[0].mxu0
        %v845 = vadd.f32 %v780, %v844
        %v846 = vpop.f32.mrb[0].mxu0
        %847 = vmatprep.mubr.bf16.mxu0 %v310
        %848 = vmatmul.mubr.bf16.gmra.mrb[0].mxu0 %v309
        %v849 = vpop.f32.mrb[0].mxu0
        %v850 = vadd.f32 %v785, %v849
        %v851 = vpop.f32.mrb[0].mxu0
        %v852 = vpop.f32.mrb[0].mxu0
        %v853 = vadd.f32 %v788, %v852
        %v854 = vpop.f32.mrb[0].mxu0
        %855 = vdwg.mxu0
        %856 = vmatprep.subr.bf16.mxu0 0
        %857 = vmatpush1.bf16.msra.mxu0 %v647
        %858 = vmatprep.subr.bf16.mxu0 0
        %859 = vmatpush1.bf16.msra.mxu0 %v648
        %860 = vmatprep.subr.bf16.mxu0 0
        %861 = vmatpush1.bf16.msra.mxu0 %v649
        %862 = vmatprep.subr.bf16.mxu0 0
        %863 = vmatpush1.bf16.msra.mxu0 %v650
        %864 = vmatprep.subr.bf16.mxu0 0
        %865 = vmatpush1.bf16.msra.mxu0 %v651
        %866 = vmatprep.subr.bf16.mxu0 0
        %867 = vmatpush1.bf16.msra.mxu0 %v652
        %868 = vmatprep.subr.bf16.mxu0 0
        %869 = vmatpush1.bf16.msra.mxu0 %v653
        %870 = vmatprep.subr.bf16.mxu0 0
        %871 = vmatpush1.bf16.msra.mxu0 %v654
        %872 = vmatprep.subr.bf16.mxu0 0
        %873 = vmatpush1.bf16.msra.mxu0 %v655
        %874 = vmatprep.subr.bf16.mxu0 0
        %875 = vmatpush1.bf16.msra.mxu0 %v656
        %876 = vmatprep.subr.bf16.mxu0 0
        %877 = vmatpush1.bf16.msra.mxu0 %v657
        %878 = vmatprep.subr.bf16.mxu0 0
        %879 = vmatpush1.bf16.msra.mxu0 %v658
        %880 = vmatprep.subr.bf16.mxu0 0
        %881 = vmatpush1.bf16.msra.mxu0 %v659
        %882 = vmatprep.subr.bf16.mxu0 0
        %883 = vmatpush1.bf16.msra.mxu0 %v660
        %884 = vmatprep.subr.bf16.mxu0 0
        %885 = vmatpush1.bf16.msra.mxu0 %v661
        %886 = vmatprep.subr.bf16.mxu0 0
        %887 = vmatpush1.bf16.msra.mxu0 %v662
        %888 = vmatprep.mubr.bf16.mxu0 %v291
        %889 = vmatmul.mubr.bf16.gmra.mrb[0].mxu0 %v290
        %v890 = vpop.f32.mrb[0].mxu0
        %v891 = vadd.f32 %v826, %v890
        %v892 = vpop.f32.mrb[0].mxu0
        %v893 = vpop.f32.mrb[0].mxu0
        %v894 = vadd.f32 %v829, %v893
        %v895 = vpop.f32.mrb[0].mxu0
        %896 = vmatprep.mubr.bf16.mxu0 %v298
        %897 = vmatmul.mubr.bf16.gmra.mrb[0].mxu0 %v297
        %v898 = vpop.f32.mrb[0].mxu0
        %v899 = vadd.f32 %v834, %v898
        %v900 = vpop.f32.mrb[0].mxu0
        %v901 = vpop.f32.mrb[0].mxu0
        %v902 = vadd.f32 %v837, %v901
        %v903 = vpop.f32.mrb[0].mxu0
        %904 = vmatprep.mubr.bf16.mxu0 %v305
        %905 = vmatmul.mubr.bf16.gmra.mrb[0].mxu0 %v304
        %v906 = vpop.f32.mrb[0].mxu0
        %v907 = vadd.f32 %v842, %v906
        %v908 = vpop.f32.mrb[0].mxu0
        %v909 = vpop.f32.mrb[0].mxu0
        %v910 = vadd.f32 %v845, %v909
        %v911 = vpop.f32.mrb[0].mxu0
        %912 = vmatprep.mubr.bf16.mxu0 %v312
        %913 = vmatmul.mubr.bf16.gmra.mrb[0].mxu0 %v311
        %v914 = vpop.f32.mrb[0].mxu0
        %v915 = vadd.f32 %v850, %v914
        %v916 = vpop.f32.mrb[0].mxu0
        %v917 = vpop.f32.mrb[0].mxu0
        %v918 = vadd.f32 %v853, %v917
        %v919 = vpop.f32.mrb[0].mxu0
        %920 = vdwg.mxu0
        %921 = vmatprep.subr.bf16.mxu0 0
        %922 = vmatpush1.bf16.msra.mxu0 %v663
        %923 = vmatprep.subr.bf16.mxu0 0
        %924 = vmatpush1.bf16.msra.mxu0 0
        %925 = vmatprep.subr.bf16.mxu0 0
        %926 = vmatpush1.bf16.msra.mxu0 0
        %927 = vmatprep.subr.bf16.mxu0 0
        %928 = vmatpush1.bf16.msra.mxu0 0
        %929 = vmatprep.subr.bf16.mxu0 0
        %930 = vmatpush1.bf16.msra.mxu0 0
        %931 = vmatprep.subr.bf16.mxu0 0
        %932 = vmatpush1.bf16.msra.mxu0 0
        %933 = vmatprep.subr.bf16.mxu0 0
        %934 = vmatpush1.bf16.msra.mxu0 0
        %935 = vmatprep.subr.bf16.mxu0 0
        %936 = vmatpush1.bf16.msra.mxu0 0
        %937 = vmatprep.subr.bf16.mxu0 0
        %938 = vmatpush1.bf16.msra.mxu0 0
        %939 = vmatprep.subr.bf16.mxu0 0
        %940 = vmatpush1.bf16.msra.mxu0 0
        %941 = vmatprep.subr.bf16.mxu0 0
        %942 = vmatpush1.bf16.msra.mxu0 0
        %943 = vmatprep.subr.bf16.mxu0 0
        %944 = vmatpush1.bf16.msra.mxu0 0
        %945 = vmatprep.subr.bf16.mxu0 0
        %946 = vmatpush1.bf16.msra.mxu0 0
        %947 = vmatprep.subr.bf16.mxu0 0
        %948 = vmatpush1.bf16.msra.mxu0 0
        %949 = vmatprep.subr.bf16.mxu0 0
        %950 = vmatpush1.bf16.msra.mxu0 0
        %951 = vmatprep.subr.bf16.mxu0 0
        %952 = vmatpush1.bf16.msra.mxu0 0
        %953 = vmatprep.mubr.bf16.mxu0 0
        %954 = vmatmul.mubr.bf16.gmra.mrb[0].mxu0 %v715
        %v955 = vpop.f32.mrb[0].mxu0
        %v956 = vadd.f32 %v891, %v955
        %v957 = vpop.f32.mrb[0].mxu0
        %v958 = vpop.f32.mrb[0].mxu0
        %v959 = vadd.f32 %v894, %v958
        %v960 = vpop.f32.mrb[0].mxu0
        %961 = vmatprep.mubr.bf16.mxu0 0
        %962 = vmatmul.mubr.bf16.gmra.mrb[0].mxu0 %v718
        %v963 = vpop.f32.mrb[0].mxu0
        %v964 = vadd.f32 %v899, %v963
        %v965 = vpop.f32.mrb[0].mxu0
        %v966 = vpop.f32.mrb[0].mxu0
        %v967 = vadd.f32 %v902, %v966
        %v968 = vpop.f32.mrb[0].mxu0
        %969 = vmatprep.mubr.bf16.mxu0 0
        %970 = vmatmul.mubr.bf16.gmra.mrb[0].mxu0 %v721
        %v971 = vpop.f32.mrb[0].mxu0
        %v972 = vadd.f32 %v907, %v971
        %v973 = vpop.f32.mrb[0].mxu0
        %v974 = vpop.f32.mrb[0].mxu0
        %v975 = vadd.f32 %v910, %v974
        %v976 = vpop.f32.mrb[0].mxu0
        %977 = vmatprep.mubr.bf16.mxu0 0
        %978 = vmatmul.mubr.bf16.gmra.mrb[0].mxu0 %v724
        %v979 = vpop.f32.mrb[0].mxu0
        %v980 = vadd.f32 %v915, %v979
        %v981 = vpop.f32.mrb[0].mxu0
        %v982 = vpop.f32.mrb[0].mxu0
        %v983 = vadd.f32 %v918, %v982
        %v984 = vpop.f32.mrb[0].mxu0
        %985 = vdwg.mxu0
        %v986 = vtanh.pop %v956
        %v987 = vtanh.pop %v959
        %v988 = vtanh.pop %v964
        %v989 = vtanh.pop %v967
        %v990 = vtanh.pop %v972
        %v991 = vtanh.pop %v975
        %v992 = vtanh.pop %v980
        %v993 = vtanh.pop %v983
        %v994 = vpack.c.bf16 %v987, %v986
        %v995 = vpack.c.bf16 %v989, %v988
        %v996 = vpack.c.bf16 %v991, %v990
        %v997 = vpack.c.bf16 %v993, %v992
        %v998 = vld [vmem:[%s3] sm:$0xf]
        %v999 = vld [vmem:[%s3 + $0x4] sm:$0xf]
        %v1000 = vld [vmem:[%s3 + $0x8] sm:$0xf]
        %v1001 = vld [vmem:[%s3 + $0xc] sm:$0xf]
        %v1002 = vld [vmem:[%s3 + $0x10] sm:$0xf]
        %v1003 = vld [vmem:[%s3 + $0x14] sm:$0xf]
        %v1004 = vld [vmem:[%s3 + $0x18] sm:$0xf]
        %v1005 = vld [vmem:[%s3 + $0x1c] sm:$0xf]
        %v1006 = vld [vmem:[%s3 + $0x20] sm:$0xf]
        %v1007 = vld [vmem:[%s3 + $0x24] sm:$0xf]
        %v1008 = vld [vmem:[%s3 + $0x28] sm:$0xf]
        %v1009 = vld [vmem:[%s3 + $0x2c] sm:$0xf]
        %v1010 = vld [vmem:[%s3 + $0x30] sm:$0xf]
        %v1011 = vld [vmem:[%s3 + $0x34] sm:$0xf]
        %v1012 = vld [vmem:[%s3 + $0x38] sm:$0xf]
        %v1013 = vld [vmem:[%s3 + $0x3c] sm:$0xf]
        %v1014 = vld [vmem:[%s4] sm:$0x1]
        %v1016 = vlaneseq
        %v1017 = vshrl.u32 %v1016, 7
        %v1018 = vsub.s32 0, %v1017
        %v1019 = vrot.slane %v1014, %v1018
        %v1037 = vunpack.c.l.b16 %v998
        %v1038 = vunpack.c.l.b16 %v999
        %v1039 = vunpack.c.l.b16 %v1000
        %v1040 = vunpack.c.l.b16 %v1001
        %v1041 = vunpack.c.l.b16 %v1002
        %v1042 = vunpack.c.l.b16 %v1003
        %v1043 = vunpack.c.l.b16 %v1004
        %v1044 = vunpack.c.l.b16 %v1005
        %v1045 = vunpack.c.l.b16 %v1006
        %v1046 = vunpack.c.l.b16 %v1007
        %v1047 = vunpack.c.l.b16 %v1008
        %v1048 = vunpack.c.l.b16 %v1009
        %v1049 = vunpack.c.l.b16 %v1010
        %v1050 = vunpack.c.l.b16 %v1011
        %v1051 = vunpack.c.l.b16 %v1012
        %v1052 = vunpack.c.l.b16 %v1013
        %v1053 = vpack.c.b16 %v1038, %v1037
        %v1054 = vpack.c.b16 %v1040, %v1039
        %v1055 = vpack.c.b16 %v1042, %v1041
        %v1056 = vpack.c.b16 %v1044, %v1043
        %v1057 = vpack.c.b16 %v1046, %v1045
        %v1058 = vpack.c.b16 %v1048, %v1047
        %v1059 = vpack.c.b16 %v1050, %v1049
        %v1060 = vpack.c.b16 %v1052, %v1051
        %1069 = vmatprep.subr.bf16.mxu0 0
        %1070 = vmatpush1.bf16.msra.mxu0 %v1053
        %1071 = vmatprep.subr.bf16.mxu0 0
        %1072 = vmatpush1.bf16.msra.mxu0 %v1054
        %1073 = vmatprep.subr.bf16.mxu0 0
        %1074 = vmatpush1.bf16.msra.mxu0 %v1055
        %1075 = vmatprep.subr.bf16.mxu0 0
        %1076 = vmatpush1.bf16.msra.mxu0 %v1056
        %1077 = vmatprep.subr.bf16.mxu0 0
        %1078 = vmatpush1.bf16.msra.mxu0 %v1057
        %1079 = vmatprep.subr.bf16.mxu0 0
        %1080 = vmatpush1.bf16.msra.mxu0 %v1058
        %1081 = vmatprep.subr.bf16.mxu0 0
        %1082 = vmatpush1.bf16.msra.mxu0 %v1059
        %1083 = vmatprep.subr.bf16.mxu0 0
        %1084 = vmatpush1.bf16.msra.mxu0 %v1060
        %1085 = vmatprep.subr.bf16.mxu0 0
        %1086 = vmatpush1.bf16.msra.mxu0 0
        %1087 = vmatprep.subr.bf16.mxu0 0
        %1088 = vmatpush1.bf16.msra.mxu0 0
        %1089 = vmatprep.subr.bf16.mxu0 0
        %1090 = vmatpush1.bf16.msra.mxu0 0
        %1091 = vmatprep.subr.bf16.mxu0 0
        %1092 = vmatpush1.bf16.msra.mxu0 0
        %1093 = vmatprep.subr.bf16.mxu0 0
        %1094 = vmatpush1.bf16.msra.mxu0 0
        %1095 = vmatprep.subr.bf16.mxu0 0
        %1096 = vmatpush1.bf16.msra.mxu0 0
        %1097 = vmatprep.subr.bf16.mxu0 0
        %1098 = vmatpush1.bf16.msra.mxu0 0
        %1099 = vmatprep.subr.bf16.mxu0 0
        %1100 = vmatpush1.bf16.msra.mxu0 0
        %1101 = vmatprep.mubr.bf16.mxu0 0
        %1102 = vmatmul.mubr.bf16.gmra.mrb[0].mxu0 %v994
        %v1103 = vpop.f32.mrb[0].mxu0
        %v1104 = vadd.f32 %v1019, %v1103
        %v1105 = vpop.f32.mrb[0].mxu0
        %v1106 = vpop.f32.mrb[0].mxu0
        %v1107 = vadd.f32 %v1019, %v1106
        %v1108 = vpop.f32.mrb[0].mxu0
        %1109 = vmatprep.mubr.bf16.mxu0 0
        %1110 = vmatmul.mubr.bf16.gmra.mrb[0].mxu0 %v995
        %v1111 = vpop.f32.mrb[0].mxu0
        %v1112 = vadd.f32 %v1019, %v1111
        %v1113 = vpop.f32.mrb[0].mxu0
        %v1114 = vpop.f32.mrb[0].mxu0
        %v1115 = vadd.f32 %v1019, %v1114
        %v1116 = vpop.f32.mrb[0].mxu0
        %1117 = vmatprep.mubr.bf16.mxu0 0
        %1118 = vmatmul.mubr.bf16.gmra.mrb[0].mxu0 %v996
        %v1119 = vpop.f32.mrb[0].mxu0
        %v1120 = vadd.f32 %v1019, %v1119
        %v1121 = vpop.f32.mrb[0].mxu0
        %v1122 = vpop.f32.mrb[0].mxu0
        %v1123 = vadd.f32 %v1019, %v1122
        %v1124 = vpop.f32.mrb[0].mxu0
        %1125 = vmatprep.mubr.bf16.mxu0 0
        %1126 = vmatmul.mubr.bf16.gmra.mrb[0].mxu0 %v997
        %v1127 = vpop.f32.mrb[0].mxu0
        %v1128 = vadd.f32 %v1019, %v1127
        %v1129 = vpop.f32.mrb[0].mxu0
        %v1130 = vpop.f32.mrb[0].mxu0
        %v1131 = vadd.f32 %v1019, %v1130
        %v1132 = vpop.f32.mrb[0].mxu0
        %1133 = vdwg.mxu0
        %v1134 = vmax.f32 %v1104, 0.0
        %v1135 = vmax.f32 %v1107, 0.0
        %v1136 = vmax.f32 %v1112, 0.0
        %v1137 = vmax.f32 %v1115, 0.0
        %v1138 = vmax.f32 %v1120, 0.0
        %v1139 = vmax.f32 %v1123, 0.0
        %v1140 = vmax.f32 %v1128, 0.0
        %v1141 = vmax.f32 %v1131, 0.0
        %v1142 = vlaneseq
        %v1143 = vand.u32 %v1142, 127
        %vm1144 = vcmp.lt.s32.totalorder %v1143, 10
        %v1145 = vsel %vm1144, %v1134, -inf
        %v1146 = vsel %vm1144, %v1135, -inf
        %v1147 = vsel %vm1144, %v1136, -inf
        %v1148 = vsel %vm1144, %v1137, -inf
        %v1149 = vsel %vm1144, %v1138, -inf
        %v1150 = vsel %vm1144, %v1139, -inf
        %v1151 = vsel %vm1144, %v1140, -inf
        %v1152 = vsel %vm1144, %v1141, -inf
        %1153 = vmax.xlane.f32.xlu0 %v1145
        %v1154 = vpop.xlane.xlu0 %1153
        %1155 = vmax.xlane.f32.xlu0 %v1146
        %v1156 = vpop.xlane.xlu0 %1155
        %1157 = vmax.xlane.f32.xlu0 %v1147
        %v1158 = vpop.xlane.xlu0 %1157
        %1159 = vmax.xlane.f32.xlu0 %v1148
        %v1160 = vpop.xlane.xlu0 %1159
        %1161 = vmax.xlane.f32.xlu0 %v1149
        %v1162 = vpop.xlane.xlu0 %1161
        %1163 = vmax.xlane.f32.xlu0 %v1150
        %v1164 = vpop.xlane.xlu0 %1163
        %1165 = vmax.xlane.f32.xlu0 %v1151
        %v1166 = vpop.xlane.xlu0 %1165
        %1167 = vmax.xlane.f32.xlu0 %v1152
        %v1168 = vpop.xlane.xlu0 %1167
        %v1169 = vsub.f32 %v1145, %v1154
        %v1170 = vsub.f32 %v1146, %v1156
        %v1171 = vsub.f32 %v1147, %v1158
        %v1172 = vsub.f32 %v1148, %v1160
        %v1173 = vsub.f32 %v1149, %v1162
        %v1174 = vsub.f32 %v1150, %v1164
        %v1175 = vsub.f32 %v1151, %v1166
        %v1176 = vsub.f32 %v1152, %v1168
        %v1177 = vmul.f32 %v1169, 1.442695
        %v1178 = vpow.pop %v1177
        %v1179 = vmul.f32 %v1170, 1.442695
        %v1180 = vpow.pop %v1179
        %v1181 = vmul.f32 %v1171, 1.442695
        %v1182 = vpow.pop %v1181
        %v1183 = vmul.f32 %v1172, 1.442695
        %v1184 = vpow.pop %v1183
        %v1185 = vmul.f32 %v1173, 1.442695
        %v1186 = vpow.pop %v1185
        %v1187 = vmul.f32 %v1174, 1.442695
        %v1188 = vpow.pop %v1187
        %v1189 = vmul.f32 %v1175, 1.442695
        %v1190 = vpow.pop %v1189
        %v1191 = vmul.f32 %v1176, 1.442695
        %v1192 = vpow.pop %v1191
        %1193 = vadd.xlane.f32.xlu0 %v1178
        %v1194 = vpop.xlane.xlu0 %1193
        %1195 = vadd.xlane.f32.xlu0 %v1180
        %v1196 = vpop.xlane.xlu0 %1195
        %1197 = vadd.xlane.f32.xlu0 %v1182
        %v1198 = vpop.xlane.xlu0 %1197
        %1199 = vadd.xlane.f32.xlu0 %v1184
        %v1200 = vpop.xlane.xlu0 %1199
        %1201 = vadd.xlane.f32.xlu0 %v1186
        %v1202 = vpop.xlane.xlu0 %1201
        %1203 = vadd.xlane.f32.xlu0 %v1188
        %v1204 = vpop.xlane.xlu0 %1203
        %1205 = vadd.xlane.f32.xlu0 %v1190
        %v1206 = vpop.xlane.xlu0 %1205
        %1207 = vadd.xlane.f32.xlu0 %v1192
        %v1208 = vpop.xlane.xlu0 %1207
        %v1209 = vlog2.pop %v1194
        %v1210 = vmul.f32 %v1209, 0.6931472
        %v1211 = vlog2.pop %v1196
        %v1212 = vmul.f32 %v1211, 0.6931472
        %v1213 = vlog2.pop %v1198
        %v1214 = vmul.f32 %v1213, 0.6931472
        %v1215 = vlog2.pop %v1200
        %v1216 = vmul.f32 %v1215, 0.6931472
        %v1217 = vlog2.pop %v1202
        %v1218 = vmul.f32 %v1217, 0.6931472
        %v1219 = vlog2.pop %v1204
        %v1220 = vmul.f32 %v1219, 0.6931472
        %v1221 = vlog2.pop %v1206
        %v1222 = vmul.f32 %v1221, 0.6931472
        %v1223 = vlog2.pop %v1208
        %v1224 = vmul.f32 %v1223, 0.6931472
        %v1225 = vsub.f32 %v1169, %v1210
        %v1226 = vsub.f32 %v1170, %v1212
        %v1227 = vsub.f32 %v1171, %v1214
        %v1228 = vsub.f32 %v1172, %v1216
        %v1229 = vsub.f32 %v1173, %v1218
        %v1230 = vsub.f32 %v1174, %v1220
        %v1231 = vsub.f32 %v1175, %v1222
        %v1232 = vsub.f32 %v1176, %v1224
        %v1233 = vpack.c.bf16 %v1226, %v1225
        %v1234 = vpack.c.bf16 %v1228, %v1227
        %v1235 = vpack.c.bf16 %v1230, %v1229
        %v1236 = vpack.c.bf16 %v1232, %v1231
        %v1241 = vunpack.c.l.b16 %v1233
        %v1242 = vunpack.c.h.b16 %v1233
        %v1243 = vunpack.c.l.b16 %v1234
        %v1244 = vunpack.c.h.b16 %v1234
        %v1245 = vunpack.c.l.b16 %v1235
        %v1246 = vunpack.c.h.b16 %v1235
        %v1247 = vunpack.c.l.b16 %v1236
        %v1248 = vunpack.c.h.b16 %v1236
        %v1249 = vpack.c.b16 %v1241, %v1241
        %v1250 = vpack.c.b16 %v1242, %v1242
        %v1251 = vpack.c.b16 %v1243, %v1243
        %v1252 = vpack.c.b16 %v1244, %v1244
        %v1253 = vpack.c.b16 %v1245, %v1245
        %v1254 = vpack.c.b16 %v1246, %v1246
        %v1255 = vpack.c.b16 %v1247, %v1247
        %v1256 = vpack.c.b16 %v1248, %v1248
        %1265 = vst [vmem:[%s220] sm:$0xf] %v1249
        %1266 = vst [vmem:[%s220 + $0x4] sm:$0xf] %v1250
        %1267 = vst [vmem:[%s220 + $0x8] sm:$0xf] %v1251
        %1268 = vst [vmem:[%s220 + $0xc] sm:$0xf] %v1252
        %1269 = vst [vmem:[%s220 + $0x10] sm:$0xf] %v1253
        %1270 = vst [vmem:[%s220 + $0x14] sm:$0xf] %v1254
        %1271 = vst [vmem:[%s220 + $0x18] sm:$0xf] %v1255
        %1272 = vst [vmem:[%s220 + $0x1c] sm:$0xf] %v1256
        %s1273 = sand.u32 %s137, 1
        %s1274 = scalar_lea.sflag [#allocation3], %s1273
        %s1275 = sand.u32 %s137, 1
        %s1276 = smul.addr %s1275, 32
        %s1277 = scalar_lea.vmem [#allocation2], %s1276
        // Predicated region
        $region41: #{tpu_custom_call.1} parent=39 // pred_check
          %p1278 = pneg %p147
        $region42: #{tpu_custom_call.1} parent=39 // pred_check_branch
          %1280 = sbr.rel (%p1278) target = $region44
        $region43: #{tpu_custom_call.1} parent=39 // pred_region
          %s1281 = smul.u32 8, %s19
          %s1283 = ssub.s32 512, 512
          %1284 = vsyncadd %s1274, %s1283
          %s1285 = smul.addr %s1281, 64
          %s1286 = scalar_lea.hbm %s5, %s1285
          %s1287 = sshll.u32 %s1277, 4
          %s1288 = int_to_ptr.vmem [resolvable:$true] %s1287
          %1293 = dma.vmem_to_hbm [thread:$0]  %s1288, 512, %s1286, %s1274, 64, 64, 4
        $region44: #{tpu_custom_call.1} parent=39 // pred_fallthru
          _
      $region40: #{tpu_custom_call.1} parent=5 // pred_fallthru
        _
      %p1294 = scmp.le.s32.totalorder 2, %s14
      // Predicated region
      $region45: #{tpu_custom_call.1} parent=5 // pred_check
        %p1295 = pneg %p1294
      $region46: #{tpu_custom_call.1} parent=5 // pred_check_branch
        %1297 = sbr.rel (%p1295) target = $region48
      $region47: #{tpu_custom_call.1} parent=5 // pred_region
        %s1298 = ssub.s32 %s14, 2
        // Predicated region
        $region49: #{tpu_custom_call.1} parent=47 // pred_check
          %p1299 = pneg %p153
        $region50: #{tpu_custom_call.1} parent=47 // pred_check_branch
          %1301 = sbr.rel (%p1299) target = $region52
        $region51: #{tpu_custom_call.1} parent=47 // pred_region
          %s1302 = sand.u32 %s138, 1
          %s1303 = scalar_lea.sflag [#allocation3], %s1302
          %s1304 = sand.u32 %s138, 1
          %s1305 = smul.addr %s1304, 32
          %s1306 = scalar_lea.vmem [#allocation2], %s1305
          %1307 = dma.done %s1303, 512
        $region52: #{tpu_custom_call.1} parent=47 // pred_fallthru
          _
      $region48: #{tpu_custom_call.1} parent=5 // pred_fallthru
        _
    $region6: #{tpu_custom_call.1} parent=1 // loop_footer
      %s18 = sadd.s32 1, %s14
    $region7: #{tpu_custom_call.1} parent=1 // loop_footer_branch
      %13 = sbr.rel target = $region3
    $region8: #{tpu_custom_call.1} parent=1 // loop_exit
      _
    %1308 = vsyncpa [#allocation3], 1
    %s1309 = scalar_lea.sflag [#allocation3], 1
    %1310 = vsyncpa %s1309, 1

</llo_original>
